<compile_context>
chip_gen: v5e
topology: v5e:2x2
jax: 0.10.0
libtpu: 0.0.40
codegen_flags: <defaults>
</compile_context>

<pallas_src>
import math

import jax
import jax.numpy as jnp
from jax.experimental import pallas as pl
from jax.experimental.pallas import tpu as pltpu


def _bidaf_attention_kernel(bias_ref, w_ref, c_ref, q_ref, cmask_ref, qmask_ref, o_ref):
    f32 = jnp.float32
    c = c_ref[...]                      # (bt, Lc, H), input dtype (f32 or bf16)
    q = q_ref[...]                      # (bt, Lq, H)
    dt = c.dtype
    bt, lc, h = c.shape
    lq = q.shape[1]

    cw = w_ref[0:1, :]                  # (1, H) f32  c_weight (lane-major)
    qw = w_ref[1:2, :]                  # (1, H) f32  q_weight
    cqw = w_ref[2:3, :]                 # (1, H) f32  cq_weight
    bias = bias_ref[0]                  # scalar from SMEM

    cf = c.astype(f32)                  # reused for s0 and the output products

    # Similarity matrix.  The q-side rank-1 term is folded into the MXU
    # contraction algebraically:  (c_i*cq_w + q_w)·q_j = (c_i*cq_w)·q_j + q_w·q_j
    # so K stays H (no augmented column, no lane-axis concat, no transpose).
    c_mod = c * cqw.astype(dt) + qw.astype(dt)                              # (bt,Lc,H)
    s = jnp.einsum("bih,bjh->bij", c_mod, q, preferred_element_type=f32)    # (bt,Lc,Lq)
    s0 = jnp.sum(cf * cw, axis=-1, keepdims=True)                           # (bt,Lc,1) f32
    s = s + s0 + bias

    neg = f32(-1e30)
    q_valid = qmask_ref[...] > 0        # (bt, 1, Lq)
    c_valid = cmask_ref[...] > 0        # (bt, Lc, 1)

    # masked softmax over the q axis (dim=2) -> p1
    lg1 = jnp.where(q_valid, s, neg)
    m1 = jnp.max(lg1, axis=2, keepdims=True)
    e1 = jnp.exp(lg1 - m1)
    p1 = e1 * pl.reciprocal(jnp.sum(e1, axis=2, keepdims=True), approx=True)

    # masked softmax over the c axis (dim=1) -> p2 (exact divide: feeds 2 matmuls)
    lg2 = jnp.where(c_valid, s, neg)
    m2 = jnp.max(lg2, axis=1, keepdims=True)
    e2 = jnp.exp(lg2 - m2)
    p2 = e2 / jnp.sum(e2, axis=1, keepdims=True)

    # a = p1 @ q ;  b = p1 @ (p2^T @ c)   -- all MXU, f32 accumulation.
    p1d = p1.astype(dt)
    a = jnp.einsum("bij,bjh->bih", p1d, q, preferred_element_type=f32)          # (bt,Lc,H)
    t = jnp.einsum("bkj,bkh->bjh", p2.astype(dt), c, preferred_element_type=f32)  # (bt,Lq,H)
    b = jnp.einsum("bij,bjh->bih", p1d, t.astype(dt), preferred_element_type=f32)  # (bt,Lc,H)

    ca = cf * a
    cb = cf * b
    odt = o_ref.dtype
    if h % 128 == 0:
        # Four lane-dense H-wide slab stores, no (bt,Lc,4H) concat copy.
        o_ref[:, :, 0:h] = c.astype(odt)
        o_ref[:, :, h:2 * h] = a.astype(odt)
        o_ref[:, :, 2 * h:3 * h] = ca.astype(odt)
        o_ref[:, :, 3 * h:4 * h] = cb.astype(odt)
    else:
        # Small H (demo: 4H == 128): a single fused lane-dense store wins.
        o_ref[...] = jnp.concatenate([cf, a, ca, cb], axis=-1).astype(odt)


def _default_vmem_limit_bytes():
    """Scoped-VMEM limit: half the chip's VMEM, clamped to [32, 64] MiB."""
    try:
        cap = int(pltpu.get_tpu_info().vmem_capacity_bytes)
    except Exception:
        cap = 64 * 1024 * 1024          # conservative (v7x per-core physical)
    return int(max(32 * 1024 * 1024, min(cap // 2, 64 * 1024 * 1024)))


def _pick_block_b(B, Lc, Lq, H, in_bytes, out_bytes, vmem_budget, min_steps=4):
    """Largest block_b dividing B s.t. the grid keeps >= min_steps steps
    (pipelining + megacore) and the per-step VMEM footprint fits the budget."""
    per_b = (
        2 * (Lc * H + Lq * H) * in_bytes      # double-buffered c and q blocks
        + 2 * (Lc * 4 * H) * out_bytes        # double-buffered output block
        + 2 * (Lc + Lq) * 4                   # mask blocks
        + 4 * Lc * Lq * 4                     # s / masked logits / e / p (f32)
        + Lq * H * 4                          # t = p2^T @ c (f32)
        + 5 * Lc * H * 4                      # cf, a, b, c*a, c*b (f32)
    )
    best = 1
    for cand in range(1, B + 1):
        if B % cand:
            continue
        if (B // cand) < min(min_steps, B):
            continue
        if cand * per_b <= vmem_budget:
            best = cand
    return best


def bidaf_attention(c, q, c_mask, q_mask, c_weight, q_weight, cq_weight, bias,
                    *, block_b=None, vmem_limit_bytes=None):
    """Pallas TPU forward of BiDAFAttention (eval mode).

    c: (B, Lc, H); q: (B, Lq, H); c_mask: (B, Lc); q_mask: (B, Lq)
    c_weight, q_weight: (H, 1); cq_weight: (1, 1, H); bias: (1,)
    Returns (B, Lc, 4*H) in the dtype of `c` (pass bf16 c/q for bf16 I/O).
    """
    B, Lc, H = c.shape
    Lq = q.shape[1]
    out_dtype = c.dtype

    if vmem_limit_bytes is None:
        vmem_limit_bytes = _default_vmem_limit_bytes()
    if block_b is None:
        block_b = _pick_block_b(
            B, Lc, Lq, H,
            in_bytes=jnp.dtype(c.dtype).itemsize,
            out_bytes=jnp.dtype(out_dtype).itemsize,
            vmem_budget=vmem_limit_bytes // 2)
    assert B % block_b == 0, "B must be divisible by block_b"

    # Weight prep in the wrapper: one lane-major (3, H) f32 slab, one tiny DMA.
    w = jnp.stack(
        [c_weight.reshape(H), q_weight.reshape(H), cq_weight.reshape(H)], axis=0
    ).astype(jnp.float32)
    bias = jnp.asarray(bias, jnp.float32).reshape(1)

    # Masks in broadcastable shapes (arbitrary 0/1 masks supported).
    c_mask3 = (c_mask != 0).astype(jnp.float32).reshape(B, Lc, 1)
    q_mask3 = (q_mask != 0).astype(jnp.float32).reshape(B, 1, Lq)

    grid = (B // block_b,)
    return pl.pallas_call(
        _bidaf_attention_kernel,
        out_shape=jax.ShapeDtypeStruct((B, Lc, 4 * H), out_dtype),
        grid=grid,
        in_specs=[
            pl.BlockSpec(memory_space=pltpu.MemorySpace.SMEM),        # bias scalar
            pl.BlockSpec((3, H), lambda i: (0, 0)),                   # packed weights
            pl.BlockSpec((block_b, Lc, H), lambda i: (i, 0, 0)),      # c
            pl.BlockSpec((block_b, Lq, H), lambda i: (i, 0, 0)),      # q
            pl.BlockSpec((block_b, Lc, 1), lambda i: (i, 0, 0)),      # c_mask
            pl.BlockSpec((block_b, 1, Lq), lambda i: (i, 0, 0)),      # q_mask
        ],
        out_specs=pl.BlockSpec((block_b, Lc, 4 * H), lambda i: (i, 0, 0)),
        compiler_params=pltpu.CompilerParams(
            dimension_semantics=("parallel",),
            vmem_limit_bytes=int(vmem_limit_bytes),
        ),
    )(bias, w, c, q, c_mask3, q_mask3)


def _xavier_uniform(key, shape):
    # mirrors torch.nn.init.xavier_uniform_ fan computation
    if len(shape) == 2:
        fan_out, fan_in = shape
    else:
        receptive = 1
        for d in shape[2:]:
            receptive *= d
        fan_in = shape[1] * receptive
        fan_out = shape[0] * receptive
    bound = math.sqrt(6.0 / (fan_in + fan_out))
    return jax.random.uniform(key, shape, jnp.float32, -bound, bound)


def _reference(c, q, c_mask, q_mask, c_weight, q_weight, cq_weight, bias):
    # pure-JAX f32 reference of the same (eval-mode) forward
    s0 = jnp.matmul(c, c_weight)                                   # (B,Lc,1)
    s1 = jnp.swapaxes(jnp.matmul(q, q_weight), 1, 2)               # (B,1,Lq)
    s2 = jnp.matmul(c * cq_weight, jnp.swapaxes(q, 1, 2))          # (B,Lc,Lq)
    s = s0 + s1 + s2 + bias[0]
    p1 = jax.nn.softmax(jnp.where(q_mask[:, None, :] > 0, s, -1e30), axis=2)
    p2 = jax.nn.softmax(jnp.where(c_mask[:, :, None] > 0, s, -1e30), axis=1)
    a = jnp.matmul(p1, q)
    b = jnp.matmul(jnp.matmul(p1, jnp.swapaxes(p2, 1, 2)), c)
    return jnp.concatenate([c, a, c * a, c * b], axis=-1)


if __name__ == "__main__":
    B, Lc, Lq = 2, 16, 8
    root = jax.random.PRNGKey(0)

    cases = [
        # (name, H, input dtype, max abs error allowed vs f32 reference)
        ("f32_fused_concat_store", 32, jnp.float32, 2e-2),   # 4H == 128 path
        ("f32_direct_slab_store", 128, jnp.float32, 2e-2),   # H % 128 == 0 path
        ("bf16_io", 32, jnp.bfloat16, 4e-1),                 # bandwidth-halving path
    ]

    for idx, (name, H, dt, tol) in enumerate(cases):
        key = jax.random.fold_in(root, idx)
        kc, kq, kcw, kqw, kcqw = jax.random.split(key, 5)
        c = jax.random.normal(kc, (B, Lc, H), jnp.float32)
        q = jax.random.normal(kq, (B, Lq, H), jnp.float32)
        c_weight = _xavier_uniform(kcw, (H, 1))
        q_weight = _xavier_uniform(kqw, (H, 1))
        cq_weight = _xavier_uniform(kcqw, (1, 1, H))
        bias = jnp.zeros((1,), jnp.float32)          # nn.Parameter(torch.zeros(1))

        c_lens = jnp.array([Lc, Lc - 5])
        q_lens = jnp.array([Lq, Lq - 3])
        c_mask = (jnp.arange(Lc)[None, :] < c_lens[:, None]).astype(jnp.float32)
        q_mask = (jnp.arange(Lq)[None, :] < q_lens[:, None]).astype(jnp.float32)

        out = bidaf_attention(c.astype(dt), q.astype(dt), c_mask, q_mask,
                              c_weight, q_weight, cq_weight, bias)
        out = jax.block_until_ready(out)
        ref = _reference(c, q, c_mask, q_mask, c_weight, q_weight, cq_weight, bias)

        assert out.shape == (B, Lc, 4 * H), (name, out.shape)
        outf = out.astype(jnp.float32)
        assert bool(jnp.all(jnp.isfinite(outf))), f"{name}: non-finite output"
        max_err = float(jnp.max(jnp.abs(outf - ref)))
        assert max_err < tol, f"{name}: kernel mismatch, max_err={max_err}"

    print("KERNEL_OK")
</pallas_src>

<mosaic_0001>
module attributes {stable_mosaic.version = 11 : i64} {
  func.func @_bidaf_attention_kernel(%arg0: i32, %arg1: memref<1xf32, #tpu.memory_space<smem>>, %arg2: memref<3x32xf32, #tpu.memory_space<vmem>>, %arg3: memref<1x16x32xf32, #tpu.memory_space<vmem>>, %arg4: memref<1x8x32xf32, #tpu.memory_space<vmem>>, %arg5: memref<1x16x1xf32, #tpu.memory_space<vmem>>, %arg6: memref<1x1x8xf32, #tpu.memory_space<vmem>>, %arg7: memref<1x16x128xf32, #tpu.memory_space<vmem>>) attributes {dimension_semantics = [#tpu.dimension_semantics<parallel>], iteration_bounds = array<i64: 2>, scalar_prefetch = 0 : i64, scratch_operands = 0 : i64, tpu.core_type = #tpu.core_type<tc>, window_params = [{transform_indices = @transform_0, window_bounds = array<i64: 1>}, {pipeline_mode = #tpu.pipeline_mode<synchronous>, transform_indices = @transform_1, window_bounds = array<i64: 3, 32>}, {transform_indices = @transform_2, window_bounds = array<i64: 1, 16, 32>}, {transform_indices = @transform_3, window_bounds = array<i64: 1, 8, 32>}, {transform_indices = @transform_4, window_bounds = array<i64: 1, 16, 1>}, {transform_indices = @transform_5, window_bounds = array<i64: 1, 1, 8>}, {transform_indices = @transform_6, window_bounds = array<i64: 1, 16, 128>}]} {
    %c0 = arith.constant 0 : index
    %c0_0 = arith.constant 0 : index
    %c0_1 = arith.constant 0 : index
    %0 = vector.load %arg3[%c0, %c0_0, %c0_1] : memref<1x16x32xf32, #tpu.memory_space<vmem>>, vector<1x16x32xf32>
    %c0_2 = arith.constant 0 : index
    %c0_3 = arith.constant 0 : index
    %c0_4 = arith.constant 0 : index
    %1 = vector.load %arg4[%c0_2, %c0_3, %c0_4] : memref<1x8x32xf32, #tpu.memory_space<vmem>>, vector<1x8x32xf32>
    %c0_5 = arith.constant 0 : index
    %c0_6 = arith.constant 0 : index
    %2 = vector.load %arg2[%c0_5, %c0_6] : memref<3x32xf32, #tpu.memory_space<vmem>>, vector<1x32xf32>
    %c1 = arith.constant 1 : index
    %c0_7 = arith.constant 0 : index
    %3 = vector.load %arg2[%c1, %c0_7] : memref<3x32xf32, #tpu.memory_space<vmem>>, vector<1x32xf32>
    %c2 = arith.constant 2 : index
    %c0_8 = arith.constant 0 : index
    %4 = vector.load %arg2[%c2, %c0_8] : memref<3x32xf32, #tpu.memory_space<vmem>>, vector<1x32xf32>
    %c0_9 = arith.constant 0 : index
    %5 = memref.load %arg1[%c0_9] : memref<1xf32, #tpu.memory_space<smem>>
    %6 = vector.shape_cast %4 : vector<1x32xf32> to vector<1x1x32xf32>
    %7 = vector.broadcast %6 : vector<1x1x32xf32> to vector<1x16x32xf32>
    %8 = arith.mulf %0, %7 : vector<1x16x32xf32>
    %9 = vector.shape_cast %3 : vector<1x32xf32> to vector<1x1x32xf32>
    %10 = vector.broadcast %9 : vector<1x1x32xf32> to vector<1x16x32xf32>
    %11 = arith.addf %8, %10 : vector<1x16x32xf32>
    "tpu.trace_start"() <{level = 10 : i32, message = "bih,bjh->bij"}> : () -> ()
    %cst = arith.constant dense<0.000000e+00> : vector<1x16x8xf32>
    %12 = tpu.matmul %11, %1, %cst {dimension_numbers = #tpu.dot_dimension_numbers<[2], [2], [1], [1], [0, 0, 0, 1, 1, 1], [0], [0]>} : vector<1x16x32xf32>, vector<1x8x32xf32>, vector<1x16x8xf32> -> vector<1x16x8xf32>
    "tpu.trace_stop"() : () -> ()
    %13 = vector.shape_cast %2 : vector<1x32xf32> to vector<1x1x32xf32>
    %14 = vector.broadcast %13 : vector<1x1x32xf32> to vector<1x16x32xf32>
    %15 = arith.mulf %0, %14 : vector<1x16x32xf32>
    %cst_10 = arith.constant dense<0.000000e+00> : vector<1x16xf32>
    %16 = vector.multi_reduction <add>, %15, %cst_10 [2] : vector<1x16x32xf32> to vector<1x16xf32>
    %17 = vector.shape_cast %16 : vector<1x16xf32> to vector<1x16x1xf32>
    %18 = vector.broadcast %17 : vector<1x16x1xf32> to vector<1x16x8xf32>
    %19 = arith.addf %12, %18 : vector<1x16x8xf32>
    %20 = vector.broadcast %5 : f32 to vector<1x16x8xf32>
    %21 = arith.addf %19, %20 : vector<1x16x8xf32>
    %c0_11 = arith.constant 0 : index
    %c0_12 = arith.constant 0 : index
    %c0_13 = arith.constant 0 : index
    %22 = vector.load %arg6[%c0_11, %c0_12, %c0_13] : memref<1x1x8xf32, #tpu.memory_space<vmem>>, vector<1x1x8xf32>
    %cst_14 = arith.constant 0.000000e+00 : f32
    %23 = vector.broadcast %cst_14 : f32 to vector<1x1x8xf32>
    %24 = arith.cmpf ogt, %22, %23 : vector<1x1x8xf32>
    %c0_15 = arith.constant 0 : index
    %c0_16 = arith.constant 0 : index
    %c0_17 = arith.constant 0 : index
    %25 = vector.load %arg5[%c0_15, %c0_16, %c0_17] : memref<1x16x1xf32, #tpu.memory_space<vmem>>, vector<1x16x1xf32>
    %cst_18 = arith.constant 0.000000e+00 : f32
    %26 = vector.broadcast %cst_18 : f32 to vector<1x16x1xf32>
    %27 = arith.cmpf ogt, %25, %26 : vector<1x16x1xf32>
    %cst_19 = arith.constant -1.000000e+30 : f32
    %28 = vector.shape_cast %24 : vector<1x1x8xi1> to vector<1x1x8xi1>
    %29 = vector.broadcast %28 : vector<1x1x8xi1> to vector<1x16x8xi1>
    %30 = vector.broadcast %cst_19 : f32 to vector<1x16x8xf32>
    %31 = arith.select %29, %21, %30 : vector<1x16x8xi1>, vector<1x16x8xf32>
    %cst_20 = arith.constant dense<0xFF800000> : vector<1x16xf32>
    %32 = vector.multi_reduction <maximumf>, %31, %cst_20 [2] : vector<1x16x8xf32> to vector<1x16xf32>
    %33 = vector.shape_cast %32 : vector<1x16xf32> to vector<1x16x1xf32>
    %34 = vector.broadcast %33 : vector<1x16x1xf32> to vector<1x16x8xf32>
    %35 = arith.subf %31, %34 : vector<1x16x8xf32>
    %36 = math.exp %35 : vector<1x16x8xf32>
    %cst_21 = arith.constant dense<0.000000e+00> : vector<1x16xf32>
    %37 = vector.multi_reduction <add>, %36, %cst_21 [2] : vector<1x16x8xf32> to vector<1x16xf32>
    %38 = vector.shape_cast %37 : vector<1x16xf32> to vector<1x16x1xf32>
    %39 = tpu.reciprocal %38 {approx = true} : vector<1x16x1xf32> -> vector<1x16x1xf32>
    %40 = vector.broadcast %39 : vector<1x16x1xf32> to vector<1x16x8xf32>
    %41 = arith.mulf %36, %40 : vector<1x16x8xf32>
    %cst_22 = arith.constant -1.000000e+30 : f32
    %42 = vector.shape_cast %27 : vector<1x16x1xi1> to vector<1x16x1xi1>
    %43 = vector.broadcast %42 : vector<1x16x1xi1> to vector<1x16x8xi1>
    %44 = vector.broadcast %cst_22 : f32 to vector<1x16x8xf32>
    %45 = arith.select %43, %21, %44 : vector<1x16x8xi1>, vector<1x16x8xf32>
    %cst_23 = arith.constant dense<0xFF800000> : vector<1x8xf32>
    %46 = vector.multi_reduction <maximumf>, %45, %cst_23 [1] : vector<1x16x8xf32> to vector<1x8xf32>
    %47 = vector.shape_cast %46 : vector<1x8xf32> to vector<1x1x8xf32>
    %48 = vector.broadcast %47 : vector<1x1x8xf32> to vector<1x16x8xf32>
    %49 = arith.subf %45, %48 : vector<1x16x8xf32>
    %50 = math.exp %49 : vector<1x16x8xf32>
    %cst_24 = arith.constant dense<0.000000e+00> : vector<1x8xf32>
    %51 = vector.multi_reduction <add>, %50, %cst_24 [1] : vector<1x16x8xf32> to vector<1x8xf32>
    %52 = vector.shape_cast %51 : vector<1x8xf32> to vector<1x1x8xf32>
    %53 = vector.broadcast %52 : vector<1x1x8xf32> to vector<1x16x8xf32>
    %54 = arith.divf %50, %53 : vector<1x16x8xf32>
    "tpu.trace_start"() <{level = 10 : i32, message = "bij,bjh->bih"}> : () -> ()
    %cst_25 = arith.constant dense<0.000000e+00> : vector<1x16x32xf32>
    %55 = tpu.matmul %41, %1, %cst_25 {dimension_numbers = #tpu.dot_dimension_numbers<[2], [1], [1], [2], [0, 0, 0, 1, 1, 2], [0], [0]>} : vector<1x16x8xf32>, vector<1x8x32xf32>, vector<1x16x32xf32> -> vector<1x16x32xf32>
    "tpu.trace_stop"() : () -> ()
    "tpu.trace_start"() <{level = 10 : i32, message = "bkj,bkh->bjh"}> : () -> ()
    %cst_26 = arith.constant dense<0.000000e+00> : vector<1x8x32xf32>
    %56 = tpu.matmul %54, %0, %cst_26 {dimension_numbers = #tpu.dot_dimension_numbers<[1], [1], [2], [2], [0, 0, 0, 2, 1, 2], [0], [0]>} : vector<1x16x8xf32>, vector<1x16x32xf32>, vector<1x8x32xf32> -> vector<1x8x32xf32>
    "tpu.trace_stop"() : () -> ()
    "tpu.trace_start"() <{level = 10 : i32, message = "bij,bjh->bih"}> : () -> ()
    %cst_27 = arith.constant dense<0.000000e+00> : vector<1x16x32xf32>
    %57 = tpu.matmul %41, %56, %cst_27 {dimension_numbers = #tpu.dot_dimension_numbers<[2], [1], [1], [2], [0, 0, 0, 1, 1, 2], [0], [0]>} : vector<1x16x8xf32>, vector<1x8x32xf32>, vector<1x16x32xf32> -> vector<1x16x32xf32>
    "tpu.trace_stop"() : () -> ()
    %58 = arith.mulf %0, %55 : vector<1x16x32xf32>
    %59 = arith.mulf %0, %57 : vector<1x16x32xf32>
    %60 = tpu.concatenate %0, %55, %58, %59 in 2 : vector<1x16x32xf32>, vector<1x16x32xf32>, vector<1x16x32xf32>, vector<1x16x32xf32> -> vector<1x16x128xf32>
    %c0_28 = arith.constant 0 : index
    %c0_29 = arith.constant 0 : index
    %c0_30 = arith.constant 0 : index
    %61 = vector.load %arg7[%c0_28, %c0_29, %c0_30] : memref<1x16x128xf32, #tpu.memory_space<vmem>>, vector<1x16x128xf32>
    tpu.vector_store %arg7[%c0_28, %c0_29, %c0_30], %60 {strides = array<i32>} : memref<1x16x128xf32, #tpu.memory_space<vmem>>, vector<1x16x128xf32>,
    return
  }
  func.func @transform_0(%arg0: i32) -> i32 {
    %c0_i32 = arith.constant 0 : i32
    %c0_i32_0 = arith.constant 0 : i32
    return %c0_i32 : i32
  }
  func.func @transform_1(%arg0: i32) -> (i32, i32) {
    %c0_i32 = arith.constant 0 : i32
    %c0_i32_0 = arith.constant 0 : i32
    %c0_i32_1 = arith.constant 0 : i32
    return %c0_i32, %c0_i32_0 : i32, i32
  }
  func.func @transform_2(%arg0: i32) -> (i32, i32, i32) {
    %c0_i32 = arith.constant 0 : i32
    %c0_i32_0 = arith.constant 0 : i32
    %c0_i32_1 = arith.constant 0 : i32
    return %arg0, %c0_i32, %c0_i32_0 : i32, i32, i32
  }
  func.func @transform_3(%arg0: i32) -> (i32, i32, i32) {
    %c0_i32 = arith.constant 0 : i32
    %c0_i32_0 = arith.constant 0 : i32
    %c0_i32_1 = arith.constant 0 : i32
    return %arg0, %c0_i32, %c0_i32_0 : i32, i32, i32
  }
  func.func @transform_4(%arg0: i32) -> (i32, i32, i32) {
    %c0_i32 = arith.constant 0 : i32
    %c0_i32_0 = arith.constant 0 : i32
    %c0_i32_1 = arith.constant 0 : i32
    return %arg0, %c0_i32, %c0_i32_0 : i32, i32, i32
  }
  func.func @transform_5(%arg0: i32) -> (i32, i32, i32) {
    %c0_i32 = arith.constant 0 : i32
    %c0_i32_0 = arith.constant 0 : i32
    %c0_i32_1 = arith.constant 0 : i32
    return %arg0, %c0_i32, %c0_i32_0 : i32, i32, i32
  }
  func.func @transform_6(%arg0: i32) -> (i32, i32, i32) {
    %c0_i32 = arith.constant 0 : i32
    %c0_i32_0 = arith.constant 0 : i32
    %c0_i32_1 = arith.constant 0 : i32
    return %arg0, %c0_i32, %c0_i32_0 : i32, i32, i32
  }
}

</mosaic_0001>

<llo_original>
// kernel: tpu_custom_call.1
$region0: #{tpu_custom_call.1}
  #allocation0 [shape = 'u32[]', space=smem, size = 0x4, offset = 0x4, fixed_abs, tag = 'smem constant byte address 0x4 - core index']
  #allocation1 [shape = 'u32[72,128]{1,0:T(1,128)}', space=vmem, size = 0x9000, scoped, tag = 'internal scratch']
  #allocation2 [shape = 'f32[1]{0:T(128)S(6)}', space=smem, size = 0x200, scoped, tag = 'scoped memory for tpu_custom_call.1']
  %s0 = inlined_call_operand.<no memory space> [shape: f32[1], index: 0, kind: input, shape index: {}]
  %s1 = inlined_call_operand.hbm [shape: f32[3,32], index: 1, kind: input, shape index: {}]
  %s2 = inlined_call_operand.vmem [shape: f32[2,16,32], index: 2, kind: input, shape index: {}]
  %s3 = inlined_call_operand.hbm [shape: f32[2,8,32], index: 3, kind: input, shape index: {}]
  %s4 = inlined_call_operand.vmem [shape: f32[2,16,1], index: 4, kind: input, shape index: {}]
  %s5 = inlined_call_operand.vmem [shape: f32[2,1,8], index: 5, kind: input, shape index: {}]
  %s6 = inlined_call_operand.hbm [shape: f32[2,16,128], index: 6, kind: output, shape index: {}]
  %s7 = sld [smem:[#allocation0]]
  $region65: #{tpu_custom_call.1} parent=0
    _
  %s9 = ssub.s32 1, %s7
  %s10 = scalar_select 0, %s9, %s7
  %11 = sst [smem:[#allocation2]] %s0
  $region1: #{tpu_custom_call.1} parent=0
    #allocation3 [shape = 'u8[2048]{0}', space=vmem, size = 0x800, scoped, tag = 'input window, operand 1, single buffered']
    #allocation4 [shape = 's32[2]{0}', space=sflag, size = 0x8, scoped, tag = 'scoped memory for tpu_custom_call.1']
    #allocation5 [shape = 's32[2]{0}', space=sflag, size = 0x8, scoped, tag = 'scoped memory for tpu_custom_call.1']
    #allocation6 [shape = 'u8[8192]{0}', space=vmem, size = 0x2000, scoped, tag = 'input window, operand 3']
    #allocation7 [shape = 's32[2]{0}', space=sflag, size = 0x8, scoped, tag = 'scoped memory for tpu_custom_call.1']
    #allocation8 [shape = 'u8[16384]{0}', space=vmem, size = 0x4000, scoped, tag = 'output window, operand 0']
    %12 = vsyncpa [#allocation4], 0
    %13 = vsyncpa [#allocation7], 0
    %s14 = scalar_lea.sflag [#allocation7], 1
    %15 = vsyncpa %s14, 0
    %16 = vsyncpa [#allocation5], 0
    %s17 = scalar_lea.sflag [#allocation5], 1
    %18 = vsyncpa %s17, 0
    loop: start=0, step=1, limit=4
    $region2: #{tpu_custom_call.1} parent=1 // loop_pre_header
      _
    $region3: #{tpu_custom_call.1} parent=1 // loop_header
      %s20 = sphi 0, %s24
      %p21 = scmp.ge.s32.totalorder %s20, 4
      %s28 = sphi 0, %s28
      %s30 = sphi 0, %s28
      %s31 = sphi 0, %s30
      %s45 = sphi 0, %s31
      %s49 = sphi 0, %s49
      %s51 = sphi 0, %s49
      %s52 = sphi 0, %s51
      %s66 = sphi 0, %s52
      %s72 = sphi 0, %s74
      %s75 = sphi 0, %s72
      %s76 = sphi 0, %s75
      %s92 = sphi 0, %s76
      %s98 = sphi 0, %s100
      %s101 = sphi 0, %s98
      %s102 = sphi 0, %s101
      %s118 = sphi 0, %s102
      %s124 = sphi 0, %s126
      %s127 = sphi 0, %s124
      %s128 = sphi 0, %s127
      %s144 = sphi 0, %s128
      %s150 = sphi 0, %s152
      %s153 = sphi 0, %s150
      %s154 = sphi 0, %s153
      %s170 = sphi 0, %s154
      %s176 = sphi 0, %s178
      %s179 = sphi 0, %s176
      %s180 = sphi 0, %s179
      %s196 = sphi 0, %s180
    $region4: #{tpu_custom_call.1} parent=1 // loop_header_branch
      %23 = sbr.rel (%p21) target = $region8
    $region5: #{tpu_custom_call.1} parent=1 // loop_body
      %s25 = ssub.s32 %s20, 1
      %s26 = ssub.s32 %s20, 2
      %s27 = sadd.s32 %s20, 1
      %s29 = sadd.s32 %s28, 1
      %p32 = scmp.eq.s32.totalorder %s20, 1
      %p33 = scmp.ne.s32.totalorder %s28, %s30
      %p34 = scmp.eq.s32.totalorder %s20, 0
      %p35 = por %p33, %p34
      %p36 = scmp.ne.s32.totalorder %s28, %s30
      %p37 = scmp.eq.s32.totalorder %s25, 1
      %p38 = por %p36, %p37
      %p39 = scmp.ne.s32.totalorder %s30, %s31
      %p40 = scmp.eq.s32.totalorder %s25, 0
      %p41 = por %p39, %p40
      %p42 = scmp.ne.s32.totalorder %s30, %s31
      %p43 = scmp.eq.s32.totalorder %s26, 1
      %p44 = por %p42, %p43
      %p46 = scmp.ne.s32.totalorder %s31, %s45
      %p47 = scmp.eq.s32.totalorder %s26, 0
      %p48 = por %p46, %p47
      %s50 = sadd.s32 %s49, 1
      %p53 = scmp.eq.s32.totalorder %s20, 1
      %p54 = scmp.ne.s32.totalorder %s49, %s51
      %p55 = scmp.eq.s32.totalorder %s20, 0
      %p56 = por %p54, %p55
      %p57 = scmp.ne.s32.totalorder %s49, %s51
      %p58 = scmp.eq.s32.totalorder %s25, 1
      %p59 = por %p57, %p58
      %p60 = scmp.ne.s32.totalorder %s51, %s52
      %p61 = scmp.eq.s32.totalorder %s25, 0
      %p62 = por %p60, %p61
      %p63 = scmp.ne.s32.totalorder %s51, %s52
      %p64 = scmp.eq.s32.totalorder %s26, 1
      %p65 = por %p63, %p64
      %p67 = scmp.ne.s32.totalorder %s52, %s66
      %p68 = scmp.eq.s32.totalorder %s26, 0
      %p69 = por %p67, %p68
      %s70 = ssub.s32 %s20, %s27
      %p71 = scmp.eq.s32.totalorder %s70, 0
      %s73 = sadd.s32 %s72, 1
      %s74 = scalar_select %p71, %s72, %s73
      %p77 = pneg %p71
      %p78 = scmp.eq.s32.totalorder %s20, 1
      %p79 = por %p77, %p78
      %p80 = scmp.ne.s32.totalorder %s72, %s75
      %p81 = scmp.eq.s32.totalorder %s20, 0
      %p82 = por %p80, %p81
      %p83 = scmp.ne.s32.totalorder %s72, %s75
      %p84 = scmp.eq.s32.totalorder %s25, 1
      %p85 = por %p83, %p84
      %p86 = scmp.ne.s32.totalorder %s75, %s76
      %p87 = scmp.eq.s32.totalorder %s25, 0
      %p88 = por %p86, %p87
      %p89 = scmp.ne.s32.totalorder %s75, %s76
      %p90 = scmp.eq.s32.totalorder %s26, 1
      %p91 = por %p89, %p90
      %p93 = scmp.ne.s32.totalorder %s76, %s92
      %p94 = scmp.eq.s32.totalorder %s26, 0
      %p95 = por %p93, %p94
      %s96 = ssub.s32 %s20, %s27
      %p97 = scmp.eq.s32.totalorder %s96, 0
      %s99 = sadd.s32 %s98, 1
      %s100 = scalar_select %p97, %s98, %s99
      %p103 = pneg %p97
      %p104 = scmp.eq.s32.totalorder %s20, 1
      %p105 = por %p103, %p104
      %p106 = scmp.ne.s32.totalorder %s98, %s101
      %p107 = scmp.eq.s32.totalorder %s20, 0
      %p108 = por %p106, %p107
      %p109 = scmp.ne.s32.totalorder %s98, %s101
      %p110 = scmp.eq.s32.totalorder %s25, 1
      %p111 = por %p109, %p110
      %p112 = scmp.ne.s32.totalorder %s101, %s102
      %p113 = scmp.eq.s32.totalorder %s25, 0
      %p114 = por %p112, %p113
      %p115 = scmp.ne.s32.totalorder %s101, %s102
      %p116 = scmp.eq.s32.totalorder %s26, 1
      %p117 = por %p115, %p116
      %p119 = scmp.ne.s32.totalorder %s102, %s118
      %p120 = scmp.eq.s32.totalorder %s26, 0
      %p121 = por %p119, %p120
      %s122 = ssub.s32 %s20, %s27
      %p123 = scmp.eq.s32.totalorder %s122, 0
      %s125 = sadd.s32 %s124, 1
      %s126 = scalar_select %p123, %s124, %s125
      %p129 = pneg %p123
      %p130 = scmp.eq.s32.totalorder %s20, 1
      %p131 = por %p129, %p130
      %p132 = scmp.ne.s32.totalorder %s124, %s127
      %p133 = scmp.eq.s32.totalorder %s20, 0
      %p134 = por %p132, %p133
      %p135 = scmp.ne.s32.totalorder %s124, %s127
      %p136 = scmp.eq.s32.totalorder %s25, 1
      %p137 = por %p135, %p136
      %p138 = scmp.ne.s32.totalorder %s127, %s128
      %p139 = scmp.eq.s32.totalorder %s25, 0
      %p140 = por %p138, %p139
      %p141 = scmp.ne.s32.totalorder %s127, %s128
      %p142 = scmp.eq.s32.totalorder %s26, 1
      %p143 = por %p141, %p142
      %p145 = scmp.ne.s32.totalorder %s128, %s144
      %p146 = scmp.eq.s32.totalorder %s26, 0
      %p147 = por %p145, %p146
      %s148 = ssub.s32 %s20, %s27
      %p149 = scmp.eq.s32.totalorder %s148, 0
      %s151 = sadd.s32 %s150, 1
      %s152 = scalar_select %p149, %s150, %s151
      %p155 = pneg %p149
      %p156 = scmp.eq.s32.totalorder %s20, 1
      %p157 = por %p155, %p156
      %p158 = scmp.ne.s32.totalorder %s150, %s153
      %p159 = scmp.eq.s32.totalorder %s20, 0
      %p160 = por %p158, %p159
      %p161 = scmp.ne.s32.totalorder %s150, %s153
      %p162 = scmp.eq.s32.totalorder %s25, 1
      %p163 = por %p161, %p162
      %p164 = scmp.ne.s32.totalorder %s153, %s154
      %p165 = scmp.eq.s32.totalorder %s25, 0
      %p166 = por %p164, %p165
      %p167 = scmp.ne.s32.totalorder %s153, %s154
      %p168 = scmp.eq.s32.totalorder %s26, 1
      %p169 = por %p167, %p168
      %p171 = scmp.ne.s32.totalorder %s154, %s170
      %p172 = scmp.eq.s32.totalorder %s26, 0
      %p173 = por %p171, %p172
      %s174 = ssub.s32 %s20, %s27
      %p175 = scmp.eq.s32.totalorder %s174, 0
      %s177 = sadd.s32 %s176, 1
      %s178 = scalar_select %p175, %s176, %s177
      %p181 = pneg %p175
      %p182 = scmp.eq.s32.totalorder %s20, 1
      %p183 = por %p181, %p182
      %p184 = scmp.ne.s32.totalorder %s176, %s179
      %p185 = scmp.eq.s32.totalorder %s20, 0
      %p186 = por %p184, %p185
      %p187 = scmp.ne.s32.totalorder %s176, %s179
      %p188 = scmp.eq.s32.totalorder %s25, 1
      %p189 = por %p187, %p188
      %p190 = scmp.ne.s32.totalorder %s179, %s180
      %p191 = scmp.eq.s32.totalorder %s25, 0
      %p192 = por %p190, %p191
      %p193 = scmp.ne.s32.totalorder %s179, %s180
      %p194 = scmp.eq.s32.totalorder %s26, 1
      %p195 = por %p193, %p194
      %p197 = scmp.ne.s32.totalorder %s180, %s196
      %p198 = scmp.eq.s32.totalorder %s26, 0
      %p199 = por %p197, %p198
      %p200 = scmp.le.s32.totalorder 1, %s20
      %p201 = scmp.lt.s32.totalorder %s20, 3
      %p202 = pnand %p200, %p201
      %p203 = pneg %p202
      // Predicated region
      $region9: #{tpu_custom_call.1} parent=5 // pred_check
        _
      $region10: #{tpu_custom_call.1} parent=5 // pred_check_branch
        %205 = sbr.rel (%p202) target = $region12
      $region11: #{tpu_custom_call.1} parent=5 // pred_region
        %s206 = ssub.s32 %s20, 1
        // Predicated region
        $region13: #{tpu_custom_call.1} parent=11 // pred_check
          %p207 = pneg %p41
        $region14: #{tpu_custom_call.1} parent=11 // pred_check_branch
          %209 = sbr.rel (%p207) target = $region16
        $region15: #{tpu_custom_call.1} parent=11 // pred_region
          _
        $region16: #{tpu_custom_call.1} parent=11 // pred_fallthru
          _
        // Predicated region
        $region17: #{tpu_custom_call.1} parent=11 // pred_check
          %p210 = pneg %p62
        $region18: #{tpu_custom_call.1} parent=11 // pred_check_branch
          %212 = sbr.rel (%p210) target = $region20
        $region19: #{tpu_custom_call.1} parent=11 // pred_region
          %214 = vsyncadd [#allocation4], 0
          %s216 = sshll.u32 %s1, 4
          %s217 = int_to_ptr.hbm [resolvable:$true] %s216
          %s218 = sshll.u32 [#allocation3], 4
          %s219 = int_to_ptr.vmem [resolvable:$true] %s218
          %221 = dma.hbm_to_vmem [thread:$0]  %s217, 64, %s219, [#allocation4]
        $region20: #{tpu_custom_call.1} parent=11 // pred_fallthru
          _
      $region12: #{tpu_custom_call.1} parent=5 // pred_fallthru
        _
      %p222 = scmp.lt.s32.totalorder %s20, 2
      // Predicated region
      $region21: #{tpu_custom_call.1} parent=5 // pred_check
        %p223 = pneg %p222
      $region22: #{tpu_custom_call.1} parent=5 // pred_check_branch
        %225 = sbr.rel (%p223) target = $region24
      $region23: #{tpu_custom_call.1} parent=5 // pred_region
        // Predicated region
        $region25: #{tpu_custom_call.1} parent=23 // pred_check
          %p226 = pneg %p82
        $region26: #{tpu_custom_call.1} parent=23 // pred_check_branch
          %228 = sbr.rel (%p226) target = $region28
        $region27: #{tpu_custom_call.1} parent=23 // pred_region
          %p229 = scmp.lt.s32.totalorder %s20, 1
          %s230 = scalar_select %p229, %s20, 1
          %s231 = smul.addr %s230, 2
          %s232 = smul.addr %s231, 8
          %s233 = scalar_lea.vmem %s2, %s232
        $region28: #{tpu_custom_call.1} parent=23 // pred_fallthru
          _
        // Predicated region
        $region29: #{tpu_custom_call.1} parent=23 // pred_check
          %p234 = pneg %p108
        $region30: #{tpu_custom_call.1} parent=23 // pred_check_branch
          %236 = sbr.rel (%p234) target = $region32
        $region31: #{tpu_custom_call.1} parent=23 // pred_region
          %s237 = sand.u32 %s98, 1
          %s238 = scalar_lea.sflag [#allocation7], %s237
          %s239 = sand.u32 %s98, 1
          %s240 = smul.addr %s239, 8
          %s241 = scalar_lea.vmem [#allocation6], %s240
          %243 = vsyncadd %s238, 0
          %s244 = smul.addr %s20, 8
          %s245 = scalar_lea.hbm %s3, %s244
          %s247 = sshll.u32 %s245, 4
          %s248 = int_to_ptr.hbm [resolvable:$true] %s247
          %s249 = sshll.u32 %s241, 4
          %s250 = int_to_ptr.vmem [resolvable:$true] %s249
          %252 = dma.hbm_to_vmem [thread:$0]  %s248, 128, %s250, %s238
        $region32: #{tpu_custom_call.1} parent=23 // pred_fallthru
          _
        // Predicated region
        $region33: #{tpu_custom_call.1} parent=23 // pred_check
          %p253 = pneg %p134
        $region34: #{tpu_custom_call.1} parent=23 // pred_check_branch
          %255 = sbr.rel (%p253) target = $region36
        $region35: #{tpu_custom_call.1} parent=23 // pred_region
          %p256 = scmp.lt.s32.totalorder %s20, 1
          %s257 = scalar_select %p256, %s20, 1
          %s258 = smul.addr %s257, 2
          %s259 = smul.addr %s258, 8
          %s260 = scalar_lea.vmem %s4, %s259
        $region36: #{tpu_custom_call.1} parent=23 // pred_fallthru
          _
        // Predicated region
        $region37: #{tpu_custom_call.1} parent=23 // pred_check
          %p261 = pneg %p160
        $region38: #{tpu_custom_call.1} parent=23 // pred_check_branch
          %263 = sbr.rel (%p261) target = $region40
        $region39: #{tpu_custom_call.1} parent=23 // pred_region
          %p264 = scmp.lt.s32.totalorder %s20, 1
          %s265 = scalar_select %p264, %s20, 1
          %s266 = scalar_lea.vmem %s5, %s265
        $region40: #{tpu_custom_call.1} parent=23 // pred_fallthru
          _
      $region24: #{tpu_custom_call.1} parent=5 // pred_fallthru
        _
      %p267 = scmp.le.s32.totalorder 1, %s20
      %p268 = scmp.lt.s32.totalorder %s20, 3
      %p269 = pnand %p267, %p268
      %p270 = pneg %p269
      // Predicated region
      $region41: #{tpu_custom_call.1} parent=5 // pred_check
        _
      $region42: #{tpu_custom_call.1} parent=5 // pred_check_branch
        %272 = sbr.rel (%p269) target = $region44
      $region43: #{tpu_custom_call.1} parent=5 // pred_region
        %s273 = ssub.s32 %s20, 1
        // Predicated region
        $region45: #{tpu_custom_call.1} parent=43 // pred_check
          %p274 = pneg %p62
        $region46: #{tpu_custom_call.1} parent=43 // pred_check_branch
          %276 = sbr.rel (%p274) target = $region48
        $region47: #{tpu_custom_call.1} parent=43 // pred_region
          %278 = dma.done [#allocation4], 64
        $region48: #{tpu_custom_call.1} parent=43 // pred_fallthru
          _
        %s279 = sand.u32 %s101, 1
        %s280 = scalar_lea.sflag [#allocation7], %s279
        %s281 = sand.u32 %s101, 1
        %s282 = smul.addr %s281, 8
        %s283 = scalar_lea.vmem [#allocation6], %s282
        // Predicated region
        $region49: #{tpu_custom_call.1} parent=43 // pred_check
          %p284 = pneg %p114
        $region50: #{tpu_custom_call.1} parent=43 // pred_check_branch
          %286 = sbr.rel (%p284) target = $region52
        $region51: #{tpu_custom_call.1} parent=43 // pred_region
          %288 = dma.done %s280, 128
        $region52: #{tpu_custom_call.1} parent=43 // pred_fallthru
          _
        %p289 = pneg %p41
        %p290 = pneg %p38
        %p291 = pneg %p62
        %p292 = pneg %p59
        %p293 = scmp.lt.s32.totalorder %s25, 1
        %s294 = scalar_select %p293, %s25, 1
        %s295 = smul.addr %s294, 2
        %s296 = smul.addr %s295, 8
        %s297 = scalar_lea.vmem %s2, %s296
        %p298 = pneg %p88
        %p299 = pneg %p85
        %s300 = sand.u32 %s101, 1
        %s301 = scalar_lea.sflag [#allocation7], %s300
        %s302 = sand.u32 %s101, 1
        %s303 = smul.addr %s302, 8
        %s304 = scalar_lea.vmem [#allocation6], %s303
        %p305 = pneg %p114
        %p306 = pneg %p111
        %p307 = scmp.lt.s32.totalorder %s25, 1
        %s308 = scalar_select %p307, %s25, 1
        %s309 = smul.addr %s308, 2
        %s310 = smul.addr %s309, 8
        %s311 = scalar_lea.vmem %s4, %s310
        %p312 = pneg %p140
        %p313 = pneg %p137
        %p314 = scmp.lt.s32.totalorder %s25, 1
        %s315 = scalar_select %p314, %s25, 1
        %s316 = scalar_lea.vmem %s5, %s315
        %p317 = pneg %p166
        %p318 = pneg %p163
        %p319 = pneg %p192
        %p320 = pneg %p189
        %s321 = sand.u32 %s179, 1
        %s322 = scalar_lea.sflag [#allocation5], %s321
        %s323 = sand.u32 %s179, 1
        %s324 = smul.addr %s323, 16
        %s325 = scalar_lea.vmem [#allocation8], %s324
        %p326 = scmp.lt.s32.totalorder %s25, 1
        %s327 = scalar_select %p326, %s25, 1
        %s328 = smul.addr %s327, 2
        %s329 = smul.addr %s328, 8
        %s330 = scalar_lea.vmem %s2, %s329
        %p331 = scmp.lt.s32.totalorder %s25, 1
        %s332 = scalar_select %p331, %s25, 1
        %s333 = smul.addr %s332, 2
        %s334 = smul.addr %s333, 8
        %s335 = scalar_lea.vmem %s4, %s334
        %p336 = scmp.lt.s32.totalorder %s25, 1
        %s337 = scalar_select %p336, %s25, 1
        %s338 = scalar_lea.vmem %s5, %s337
        %v339 = vld [vmem:[%s330] sm:$0xff]
        %v340 = vld [vmem:[%s330 + $0x8] sm:$0xff]
        %v341 = vld [vmem:[%s283] sm:$0xff]
        %v342 = vld [vmem:[#allocation3] sm:$0x1]
        %v343 = vld [vmem:[#allocation3 + $0x1] sm:$0x1]
        %v344 = vld [vmem:[#allocation3 + $0x2] sm:$0x1]
        %s345 = sld [smem:[#allocation2]]
        %v346 = vperm.slane %v344, 0
        %v347 = vmul.f32 %v339, %v346
        %v348 = vmul.f32 %v340, %v346
        %v349 = vperm.slane %v343, 0
        %v350 = vadd.f32 %v347, %v349
        %v351 = vadd.f32 %v348, %v349
        %v352 = vperm.slane %v342, 0
        %v353 = vmul.f32 %v339, %v352
        %v354 = vmul.f32 %v340, %v352
        %vm355 = vcmask 261120
        %v356 = vsel %vm355, %v353, 0.0
        %357 = vadd.xlane.f32.xlu0 %v356
        %v358 = vpop.xlane.xlu0 %357
        %v359 = vsel %vm355, %v354, 0.0
        %360 = vadd.xlane.f32.xlu0 %v359
        %v361 = vpop.xlane.xlu0 %360
        %v363 = vsel %vm355, %v350, 0
        %v366 = vsel %vm355, %v351, 0
        %v369 = vsel %vm355, %v341, 0
        %371 = vmatpush.xpose.msra.mxu0 0.0
        %372 = vmatpush.xpose.msra.mxu0 0.0
        %373 = vmatpush.xpose.msra.mxu0 0.0
        %374 = vmatpush.xpose.msra.mxu0 0.0
        %375 = vmatpush.xpose.msra.mxu0 0.0
        %376 = vmatpush.xpose.msra.mxu0 0.0
        %377 = vmatpush.xpose.msra.mxu0 0.0
        %378 = vmatpush.xpose.msra.mxu0 0.0
        %379 = vmatpush.xpose.msra.mxu0 0.0
        %380 = vmatpush.xpose.msra.mxu0 0.0
        %381 = vmatpush.xpose.msra.mxu0 0.0
        %382 = vmatpush.xpose.msra.mxu0 0.0
        %383 = vmatpush.xpose.msra.mxu0 0.0
        %384 = vmatpush.xpose.msra.mxu0 0.0
        %385 = vmatpush.xpose.msra.mxu0 0.0
        %386 = vmatpush.xpose.msra.mxu0 %v369
        %387 = vmatmul.f32.gmra.mxu0 %v363
        %v388 = vpop.f32.mrf.mxu0
        %v389 = vadd.f32 %v358, %v388
        %390 = vmatmul.f32.gmra.mxu0 %v366
        %v391 = vpop.f32.mrf.mxu0
        %v392 = vadd.f32 %v361, %v391
        %393 = vdwg.mxu0
        %v394 = vstv %s345
        %v395 = vadd.f32 %v389, %v394
        %v396 = vadd.f32 %v392, %v394
        %v397 = vld [vmem:[%s338] sm:$0x1]
        %vm398 = vcmp.gt.f32.partialorder %v397, 0.0
        %v399 = vld [vmem:[%s335] sm:$0xff]
        %v400 = vld [vmem:[%s335 + $0x8] sm:$0xff]
        %vm401 = vcmp.gt.f32.partialorder %v399, 0.0
        %vm402 = vcmp.gt.f32.partialorder %v400, 0.0
        %v403 = vsel %vm398, 1, 0
        %v404 = vperm.slane %v403, 0
        %vm405 = vcmp.eq.s32.totalorder %v404, 1
        %v406 = vsel %vm405, %v395, -1e+30
        %v407 = vsel %vm405, %v396, -1e+30
        %vm408 = vcmask 64512
        %v409 = vsel %vm408, %v406, -inf
        %410 = vmax.xlane.f32.xlu0 %v409
        %v411 = vpop.xlane.xlu0 %410
        %v412 = vsel %vm408, %v407, -inf
        %413 = vmax.xlane.f32.xlu0 %v412
        %v414 = vpop.xlane.xlu0 %413
        %v415 = vsub.f32 %v406, %v411
        %v416 = vsub.f32 %v407, %v414
        %v417 = vmul.f32 %v415, 1.442695
        %v418 = vpow.pop %v417
        %v419 = vmul.f32 %v416, 1.442695
        %v420 = vpow.pop %v419
        %v421 = vsel %vm408, %v418, 0.0
        %422 = vadd.xlane.f32.xlu0 %v421
        %v423 = vpop.xlane.xlu0 %422
        %v424 = vsel %vm408, %v420, 0.0
        %425 = vadd.xlane.f32.xlu0 %v424
        %v426 = vpop.xlane.xlu0 %425
        %v427 = vrcp.pop %v423
        %v428 = vrcp.pop %v426
        %v429 = vmul.f32 %v418, %v427
        %v430 = vmul.f32 %v420, %v428
        %v431 = vsel %vm401, 1, 0
        %v432 = vsel %vm402, 1, 0
        %433 = vset.pattern.permute.xlu0 0
        %434 = vperm.xlu0 %433, %v431
        %v435 = vpop.permute.xlu0 %434
        %436 = vset.pattern.permute.xlu0 0
        %437 = vperm.xlu0 %436, %v432
        %v438 = vpop.permute.xlu0 %437
        %vm439 = vcmp.eq.s32.totalorder %v435, 1
        %vm440 = vcmp.eq.s32.totalorder %v438, 1
        %v441 = vsel %vm439, %v395, -1e+30
        %v442 = vsel %vm440, %v396, -1e+30
        %v443 = vsel %vm408, %v441, -inf
        %v444 = vsel %vm408, %v442, -inf
        %v445 = vmax.f32 %v443, %v444
        %v446 = vrot.slane %v445, 4
        %v447 = vmax.f32 %v445, %v446
        %v448 = vrot.slane %v447, 2
        %v449 = vmax.f32 %v447, %v448
        %v450 = vrot.slane %v449, 1
        %v451 = vmax.f32 %v449, %v450
        %v452 = vsub.f32 %v441, %v451
        %v453 = vsub.f32 %v442, %v451
        %v454 = vmul.f32 %v452, 1.442695
        %v455 = vpow.pop %v454
        %v456 = vmul.f32 %v453, 1.442695
        %v457 = vpow.pop %v456
        %v458 = vsel %vm408, %v455, 0.0
        %v459 = vsel %vm408, %v457, 0.0
        %v460 = vadd.f32 %v458, %v459
        %v461 = vrot.slane %v460, 4
        %v462 = vadd.f32 %v460, %v461
        %v463 = vrot.slane %v462, 2
        %v464 = vadd.f32 %v462, %v463
        %v465 = vrot.slane %v464, 1
        %v466 = vadd.f32 %v464, %v465
        %v467 = vrcp.pop %v466
        %v468 = vmul.f32 %v466, %v467
        %v469 = vsub.f32 1.0, %v468
        %v470 = vmul.f32 %v467, %v469
        %v471 = vadd.f32 %v467, %v470
        %vm472 = vweird.f32 %v466
        %vm473 = vweird.f32 %v467
        %vm474 = vmor %vm472, %vm473
        %v475 = vsel %vm474, %v467, %v471
        %v476 = vand.u32 2147483647, %v466
        %vm477 = vcmp.eq.f32.partialorder %v476, 8.507059e+37
        %v478 = vand.u32 %v466, 2147483648
        %v479 = vor.u32 1.1754944e-38, %v478
        %v480 = vsel %vm477, %v479, %v475
        %v481 = vmul.f32 %v455, %v480
        %v482 = vmul.f32 %v457, %v480
        %v484 = vsel %vm408, %v429, 0
        %v487 = vsel %vm408, %v430, 0
        %489 = vmatpush.msra.mxu0 0.0
        %490 = vmatpush.msra.mxu0 0.0
        %491 = vmatpush.msra.mxu0 0.0
        %492 = vmatpush.msra.mxu0 0.0
        %493 = vmatpush.msra.mxu0 0.0
        %494 = vmatpush.msra.mxu0 0.0
        %495 = vmatpush.msra.mxu0 0.0
        %496 = vmatpush.msra.mxu0 0.0
        %497 = vmatpush.msra.mxu0 0.0
        %498 = vmatpush.msra.mxu0 0.0
        %499 = vmatpush.msra.mxu0 0.0
        %500 = vmatpush.msra.mxu0 0.0
        %501 = vmatpush.msra.mxu0 0.0
        %502 = vmatpush.msra.mxu0 0.0
        %503 = vmatpush.msra.mxu0 0.0
        %504 = vmatpush.msra.mxu0 %v341
        %505 = vmatmul.f32.gmra.mxu0 %v484
        %v506 = vpop.f32.mrf.mxu0
        %v507 = vadd.f32 0.0, %v506
        %508 = vmatmul.f32.gmra.mxu0 %v487
        %v509 = vpop.f32.mrf.mxu0
        %v510 = vadd.f32 0.0, %v509
        %511 = vdwg.mxu0
        %512 = vxpose.xlu0.b32.start [1/16] %v481, 128
        %513 = vxpose.xlu0.b32.cont [2/16] %v482, 128
        %514 = vxpose.xlu0.b32.cont [3/16] 0.0, 128
        %515 = vxpose.xlu0.b32.cont [4/16] 0.0, 128
        %516 = vxpose.xlu0.b32.cont [5/16] 0.0, 128
        %517 = vxpose.xlu0.b32.cont [6/16] 0.0, 128
        %518 = vxpose.xlu0.b32.cont [7/16] 0.0, 128
        %519 = vxpose.xlu0.b32.cont [8/16] 0.0, 128
        %520 = vxpose.xlu0.b32.cont [9/16] 0.0, 128
        %521 = vxpose.xlu0.b32.cont [10/16] 0.0, 128
        %522 = vxpose.xlu0.b32.cont [11/16] 0.0, 128
        %523 = vxpose.xlu0.b32.cont [12/16] 0.0, 128
        %524 = vxpose.xlu0.b32.cont [13/16] 0.0, 128
        %525 = vxpose.xlu0.b32.cont [14/16] 0.0, 128
        %526 = vxpose.xlu0.b32.cont [15/16] 0.0, 128
        %527 = vxpose.xlu0.b32.end [16/16] 0.0, 128
        %v528 = vpop.trf.xlu0
        %v529 = vpop.trf.xlu0
        %v530 = vpop.trf.xlu0
        %v531 = vpop.trf.xlu0
        %v532 = vpop.trf.xlu0
        %v533 = vpop.trf.xlu0
        %v534 = vpop.trf.xlu0
        %v535 = vpop.trf.xlu0
        %v536 = vpop.trf.xlu0
        %v537 = vpop.trf.xlu0
        %v538 = vpop.trf.xlu0
        %v539 = vpop.trf.xlu0
        %v540 = vpop.trf.xlu0
        %v541 = vpop.trf.xlu0
        %v542 = vpop.trf.xlu0
        %v543 = vpop.trf.xlu0
        %vm544 = vcmask 130048
        %v546 = vsel %vm544, %v528, 0
        %548 = vmatpush.msra.mxu0 0.0
        %549 = vmatpush.msra.mxu0 0.0
        %550 = vmatpush.msra.mxu0 0.0
        %551 = vmatpush.msra.mxu0 0.0
        %552 = vmatpush.msra.mxu0 0.0
        %553 = vmatpush.msra.mxu0 0.0
        %554 = vmatpush.msra.mxu0 0.0
        %555 = vmatpush.msra.mxu0 0.0
        %556 = vmatpush.msra.mxu0 0.0
        %557 = vmatpush.msra.mxu0 0.0
        %558 = vmatpush.msra.mxu0 0.0
        %559 = vmatpush.msra.mxu0 0.0
        %560 = vmatpush.msra.mxu0 0.0
        %561 = vmatpush.msra.mxu0 0.0
        %562 = vmatpush.msra.mxu0 %v340
        %563 = vmatpush.msra.mxu0 %v339
        %564 = vmatmul.f32.gmra.mxu0 %v546
        %v565 = vpop.f32.mrf.mxu0
        %v566 = vadd.f32 0.0, %v565
        %567 = vdwg.mxu0
        %568 = vmatpush.msra.mxu0 0.0
        %569 = vmatpush.msra.mxu0 0.0
        %570 = vmatpush.msra.mxu0 0.0
        %571 = vmatpush.msra.mxu0 0.0
        %572 = vmatpush.msra.mxu0 0.0
        %573 = vmatpush.msra.mxu0 0.0
        %574 = vmatpush.msra.mxu0 0.0
        %575 = vmatpush.msra.mxu0 0.0
        %576 = vmatpush.msra.mxu0 0.0
        %577 = vmatpush.msra.mxu0 0.0
        %578 = vmatpush.msra.mxu0 0.0
        %579 = vmatpush.msra.mxu0 0.0
        %580 = vmatpush.msra.mxu0 0.0
        %581 = vmatpush.msra.mxu0 0.0
        %582 = vmatpush.msra.mxu0 0.0
        %583 = vmatpush.msra.mxu0 %v566
        %584 = vmatmul.f32.gmra.mxu0 %v484
        %v585 = vpop.f32.mrf.mxu0
        %v586 = vadd.f32 0.0, %v585
        %587 = vmatmul.f32.gmra.mxu0 %v487
        %v588 = vpop.f32.mrf.mxu0
        %v589 = vadd.f32 0.0, %v588
        %590 = vdwg.mxu0
        %v591 = vmul.f32 %v339, %v507
        %v592 = vmul.f32 %v340, %v510
        %v593 = vmul.f32 %v339, %v586
        %v594 = vmul.f32 %v340, %v589
        %597 = vrot.lane.b32.xlu0 %v507, 32
        %v598 = vpop.permute.xlu0 %597
        %599 = vrot.lane.b32.xlu0 %v510, 32
        %v600 = vpop.permute.xlu0 %599
        %605 = vrot.lane.b32.xlu0 %v591, 64
        %v606 = vpop.permute.xlu0 %605
        %607 = vrot.lane.b32.xlu0 %v592, 64
        %v608 = vpop.permute.xlu0 %607
        %613 = vrot.lane.b32.xlu0 %v593, 96
        %v614 = vpop.permute.xlu0 %613
        %615 = vrot.lane.b32.xlu0 %v594, 96
        %v616 = vpop.permute.xlu0 %615
        %v619 = vsel %vm355, %v339, %v598
        %v620 = vsel %vm355, %v340, %v600
        %vm621 = vcmask 523264
        %v622 = vsel %vm621, %v619, %v606
        %v623 = vsel %vm621, %v620, %v608
        %vm624 = vcmask 785408
        %v625 = vsel %vm624, %v622, %v614
        %v626 = vsel %vm624, %v623, %v616
        %627 = vst [vmem:[%s325] sm:$0xff] %v625
        %628 = vst [vmem:[%s325 + $0x8] sm:$0xff] %v626
        %s629 = sand.u32 %s179, 1
        %s630 = scalar_lea.sflag [#allocation5], %s629
        %s631 = sand.u32 %s179, 1
        %s632 = smul.addr %s631, 16
        %s633 = scalar_lea.vmem [#allocation8], %s632
        // Predicated region
        $region53: #{tpu_custom_call.1} parent=43 // pred_check
          %p634 = pneg %p189
        $region54: #{tpu_custom_call.1} parent=43 // pred_check_branch
          %636 = sbr.rel (%p634) target = $region56
        $region55: #{tpu_custom_call.1} parent=43 // pred_region
          %638 = vsyncadd %s630, 0
          %s639 = smul.addr %s25, 2
          %s640 = smul.addr %s639, 8
          %s641 = scalar_lea.hbm %s6, %s640
          %s642 = sshll.u32 %s633, 4
          %s643 = int_to_ptr.vmem [resolvable:$true] %s642
          %s644 = sshll.u32 %s641, 4
          %s645 = int_to_ptr.hbm [resolvable:$true] %s644
          %650 = dma.vmem_to_hbm [thread:$0]  %s643, 256, %s645, %s630, 128, 128, 8
        $region56: #{tpu_custom_call.1} parent=43 // pred_fallthru
          _
      $region44: #{tpu_custom_call.1} parent=5 // pred_fallthru
        _
      %p651 = scmp.le.s32.totalorder 2, %s20
      // Predicated region
      $region57: #{tpu_custom_call.1} parent=5 // pred_check
        %p652 = pneg %p651
      $region58: #{tpu_custom_call.1} parent=5 // pred_check_branch
        %654 = sbr.rel (%p652) target = $region60
      $region59: #{tpu_custom_call.1} parent=5 // pred_region
        %s655 = ssub.s32 %s20, 2
        // Predicated region
        $region61: #{tpu_custom_call.1} parent=59 // pred_check
          %p656 = pneg %p195
        $region62: #{tpu_custom_call.1} parent=59 // pred_check_branch
          %658 = sbr.rel (%p656) target = $region64
        $region63: #{tpu_custom_call.1} parent=59 // pred_region
          %s659 = sand.u32 %s180, 1
          %s660 = scalar_lea.sflag [#allocation5], %s659
          %s661 = sand.u32 %s180, 1
          %s662 = smul.addr %s661, 16
          %s663 = scalar_lea.vmem [#allocation8], %s662
          %665 = dma.done %s660, 256
        $region64: #{tpu_custom_call.1} parent=59 // pred_fallthru
          _
      $region60: #{tpu_custom_call.1} parent=5 // pred_fallthru
        _
    $region6: #{tpu_custom_call.1} parent=1 // loop_footer
      %s24 = sadd.s32 1, %s20
    $region7: #{tpu_custom_call.1} parent=1 // loop_footer_branch
      %19 = sbr.rel target = $region3
    $region8: #{tpu_custom_call.1} parent=1 // loop_exit
      _
    %666 = vsyncpa [#allocation4], 1
    %s667 = scalar_lea.sflag [#allocation4], 1
    %668 = vsyncpa %s667, 1
    %669 = vsyncpa [#allocation7], 1
    %s670 = scalar_lea.sflag [#allocation7], 1
    %671 = vsyncpa %s670, 1
    %672 = vsyncpa [#allocation5], 1
    %s673 = scalar_lea.sflag [#allocation5], 1
    %674 = vsyncpa %s673, 1

</llo_original>
